<compile_context>
chip_gen: v7x
topology: tpu7x:2x2x1
jax: 0.10.0
libtpu: 0.0.40
codegen_flags: <defaults>
</compile_context>

<pallas_src>
import jax
import jax.numpy as jnp
from jax.experimental import pallas as pl
from jax.experimental.pallas import tpu as pltpu

_EPS = 1e-5


def _ln_kernel_nobias(x_ref, w_ref, o_ref):
    # x_ref: (1, C, T).  Normalize each lane (spatial position) over C.
    x = x_ref[0].astype(jnp.float32)                   # (C, T) f32
    inv_c = 1.0 / x.shape[0]
    mu = jnp.sum(x, axis=0, keepdims=True) * inv_c     # (1, T)
    ex2 = jnp.sum(x * x, axis=0, keepdims=True) * inv_c
    var = jnp.maximum(ex2 - mu * mu, 0.0)              # biased var, clamp cancellation
    inv = jax.lax.rsqrt(var + _EPS)                    # (1, T)
    w = w_ref[...]                                     # (C, 1) f32
    o_ref[0] = ((x - mu) * (inv * w)).astype(o_ref.dtype)


def _ln_kernel_bias(x_ref, w_ref, b_ref, o_ref):
    x = x_ref[0].astype(jnp.float32)                   # (C, T) f32
    inv_c = 1.0 / x.shape[0]
    mu = jnp.sum(x, axis=0, keepdims=True) * inv_c
    ex2 = jnp.sum(x * x, axis=0, keepdims=True) * inv_c
    var = jnp.maximum(ex2 - mu * mu, 0.0)
    inv = jax.lax.rsqrt(var + _EPS)
    w = w_ref[...]                                     # (C, 1) f32
    b = b_ref[...]                                     # (C, 1) f32
    o_ref[0] = ((x - mu) * (inv * w) + b).astype(o_ref.dtype)


def _round_up(n, m):
    return (n + m - 1) // m * m


_TARGET_BLOCK_BYTES = 2 << 20   # ~2 MiB of input per block
_MIN_GRID_STEPS = 4             # >= 2 steps per TC on v7x; DMA/compute overlap on v5e/v6e


def _pick_lane_tile(c, hw, n_batch, itemsize):
    # Lanes per block targeting ~_TARGET_BLOCK_BYTES of input, multiple of 128.
    lanes = (_TARGET_BLOCK_BYTES // max(c * itemsize, 1)) // 128 * 128
    lanes = max(128, lanes)
    # Tile must be a multiple of 128 (interior blocks unmasked; partial last
    # block masked) or equal the full H*W extent.
    t = hw if hw <= lanes else lanes
    # Shrink (to multiples of 128) until there are enough grid steps to pipeline.
    while n_batch * pl.cdiv(hw, t) < _MIN_GRID_STEPS and t > 128:
        half = _round_up(-(-t // 2), 128)
        if half >= t:
            break
        t = half
    return t


def layernorm_nchw(x, weight, bias=None, *, lane_tile=None):
    """x: (B, C, H, W); LayerNorm over C at each spatial position. Returns NCHW."""
    B, C, H, W = x.shape
    HW = H * W
    x3 = x.reshape(B, C, HW)        # free reshape of the native NCHW layout

    itemsize = jnp.dtype(x.dtype).itemsize
    T = lane_tile if lane_tile is not None else _pick_lane_tile(C, HW, B, itemsize)
    n_hw = pl.cdiv(HW, T)           # partial last lane-block is fine: lanes are
                                    # independent, partial stores are masked.

    x_spec = pl.BlockSpec((1, C, T), lambda b, j: (b, 0, j))
    wb_spec = pl.BlockSpec((C, 1), lambda b, j: (0, 0))
    w2 = weight.astype(jnp.float32).reshape(C, 1)

    if bias is None:
        kernel = _ln_kernel_nobias
        operands = (x3, w2)
        in_specs = [x_spec, wb_spec]
    else:
        kernel = _ln_kernel_bias
        operands = (x3, w2, bias.astype(jnp.float32).reshape(C, 1))
        in_specs = [x_spec, wb_spec, wb_spec]

    # VMEM budget: double-buffered in + out blocks + ~4 f32 temporaries, 2x headroom.
    block_bytes = C * T * itemsize
    f32_bytes = C * T * 4
    vmem_need = 4 * block_bytes + 4 * f32_bytes + (1 << 20)
    vmem_limit = int(min(48 << 20, max(16 << 20, 2 * vmem_need)))

    y3 = pl.pallas_call(
        kernel,
        out_shape=jax.ShapeDtypeStruct((B, C, HW), x.dtype),
        grid_spec=pltpu.PrefetchScalarGridSpec(
            num_scalar_prefetch=0,
            grid=(B, n_hw),
            in_specs=in_specs,
            out_specs=pl.BlockSpec((1, C, T), lambda b, j: (b, 0, j)),
        ),
        compiler_params=pltpu.CompilerParams(
            dimension_semantics=("parallel", "parallel"),
            vmem_limit_bytes=vmem_limit,
        ),
    )(*operands)

    return y3.reshape(B, C, H, W)


class LayerNormPallas:
    """JAX/Pallas equivalent of the PyTorch LayerNorm module (NCHW in/out)."""

    def __init__(self, dim, LayerNorm_type="BiasFree"):
        self.dim = dim
        self.ln_type = LayerNorm_type
        # nn.Parameter(torch.ones(dim)); bias only for the WithBias variant.
        self.weight = jnp.ones((dim,), dtype=jnp.float32)
        self.bias = (None if LayerNorm_type == "BiasFree"
                     else jnp.zeros((dim,), dtype=jnp.float32))

    def __call__(self, x):
        B, C, H, W = x.shape
        assert C == self.dim
        return layernorm_nchw(x, self.weight, self.bias)


def _reference(x, weight, bias=None):
    # Pure-JAX mirror of the PyTorch forward (to_3d -> LN over C -> to_4d).
    B, C, H, W = x.shape
    x3 = jnp.transpose(x, (0, 2, 3, 1)).reshape(B, H * W, C).astype(jnp.float32)
    mu = jnp.mean(x3, axis=-1, keepdims=True)
    var = jnp.mean((x3 - mu) ** 2, axis=-1, keepdims=True)
    y3 = (x3 - mu) / jnp.sqrt(var + _EPS) * weight
    if bias is not None:
        y3 = y3 + bias
    return y3.reshape(B, H, W, C).transpose(0, 3, 1, 2).astype(x.dtype)


if __name__ == "__main__":
    key = jax.random.PRNGKey(0)
    kx, kw, kb, kx2 = jax.random.split(key, 4)

    # Primary shape consistent with the module (NCHW channel LayerNorm).
    B, C, H, W = 2, 4, 16, 16
    x = jax.random.normal(kx, (B, C, H, W), dtype=jnp.float32)

    for ln_type in ("BiasFree", "WithBias"):
        ln = LayerNormPallas(C, LayerNorm_type=ln_type)
        # Non-trivial affine params so the check is meaningful.
        ln.weight = jax.random.normal(kw, (C,), dtype=jnp.float32)
        if ln.bias is not None:
            ln.bias = jax.random.normal(kb, (C,), dtype=jnp.float32)

        y = jax.block_until_ready(ln(x))
        y_ref = _reference(x, ln.weight, ln.bias)
        assert y.shape == (B, C, H, W)
        assert jnp.allclose(y, y_ref, atol=1e-4, rtol=1e-4), ln_type

    # Also exercise the masked partial last lane-block (H*W not a multiple of
    # the 128-aligned tile) that replaced the old pad/slice path.
    x2 = jax.random.normal(kx2, (1, C, 13, 17), dtype=jnp.float32)
    w_np = jax.random.normal(kw, (C,), dtype=jnp.float32)
    y2 = jax.block_until_ready(layernorm_nchw(x2, w_np))
    y2_ref = _reference(x2, w_np, None)
    assert y2.shape == x2.shape
    assert jnp.allclose(y2, y2_ref, atol=1e-4, rtol=1e-4)

    print("KERNEL_OK")
</pallas_src>

<mosaic_0001>
module attributes {stable_mosaic.version = 11 : i64} {
  func.func @_ln_kernel_nobias(%arg0: i32, %arg1: i32, %arg2: memref<1x4x128xf32, #tpu.memory_space<vmem>>, %arg3: memref<4x1xf32, #tpu.memory_space<vmem>>, %arg4: memref<1x4x128xf32, #tpu.memory_space<vmem>>) attributes {dimension_semantics = [#tpu.dimension_semantics<parallel>, #tpu.dimension_semantics<parallel>], iteration_bounds = array<i64: 2, 2>, scalar_prefetch = 0 : i64, scratch_operands = 0 : i64, tpu.core_type = #tpu.core_type<tc>, window_params = [{transform_indices = @transform_0, window_bounds = array<i64: 1, 4, 128>}, {pipeline_mode = #tpu.pipeline_mode<synchronous>, transform_indices = @transform_1, window_bounds = array<i64: 4, 1>}, {transform_indices = @transform_2, window_bounds = array<i64: 1, 4, 128>}]} {
    %c0 = arith.constant 0 : index
    %c0_0 = arith.constant 0 : index
    %c0_1 = arith.constant 0 : index
    %0 = vector.load %arg2[%c0, %c0_0, %c0_1] : memref<1x4x128xf32, #tpu.memory_space<vmem>>, vector<1x4x128xf32>
    %1 = vector.shape_cast %0 : vector<1x4x128xf32> to vector<4x128xf32>
    %cst = arith.constant dense<0.000000e+00> : vector<128xf32>
    %2 = vector.multi_reduction <add>, %1, %cst [0] : vector<4x128xf32> to vector<128xf32>
    %3 = vector.shape_cast %2 : vector<128xf32> to vector<1x128xf32>
    %cst_2 = arith.constant 2.500000e-01 : f32
    %4 = vector.broadcast %cst_2 : f32 to vector<1x128xf32>
    %5 = arith.mulf %3, %4 : vector<1x128xf32>
    %6 = arith.mulf %1, %1 : vector<4x128xf32>
    %cst_3 = arith.constant dense<0.000000e+00> : vector<128xf32>
    %7 = vector.multi_reduction <add>, %6, %cst_3 [0] : vector<4x128xf32> to vector<128xf32>
    %8 = vector.shape_cast %7 : vector<128xf32> to vector<1x128xf32>
    %cst_4 = arith.constant 2.500000e-01 : f32
    %9 = vector.broadcast %cst_4 : f32 to vector<1x128xf32>
    %10 = arith.mulf %8, %9 : vector<1x128xf32>
    %11 = arith.mulf %5, %5 : vector<1x128xf32>
    %12 = arith.subf %10, %11 : vector<1x128xf32>
    %cst_5 = arith.constant 0.000000e+00 : f32
    %13 = vector.broadcast %cst_5 : f32 to vector<1x128xf32>
    %14 = arith.maximumf %12, %13 : vector<1x128xf32>
    %cst_6 = arith.constant 9.99999974E-6 : f32
    %15 = vector.broadcast %cst_6 : f32 to vector<1x128xf32>
    %16 = arith.addf %14, %15 : vector<1x128xf32>
    %17 = math.rsqrt %16 : vector<1x128xf32>
    %c0_7 = arith.constant 0 : index
    %c0_8 = arith.constant 0 : index
    %18 = vector.load %arg3[%c0_7, %c0_8] : memref<4x1xf32, #tpu.memory_space<vmem>>, vector<4x1xf32>
    %19 = vector.broadcast %5 : vector<1x128xf32> to vector<4x128xf32>
    %20 = arith.subf %1, %19 : vector<4x128xf32>
    %21 = vector.broadcast %17 : vector<1x128xf32> to vector<4x128xf32>
    %22 = vector.broadcast %18 : vector<4x1xf32> to vector<4x128xf32>
    %23 = arith.mulf %21, %22 : vector<4x128xf32>
    %24 = arith.mulf %20, %23 : vector<4x128xf32>
    %c0_9 = arith.constant 0 : index
    %c0_10 = arith.constant 0 : index
    %c0_11 = arith.constant 0 : index
    %25 = vector.load %arg4[%c0_9, %c0_10, %c0_11] : memref<1x4x128xf32, #tpu.memory_space<vmem>>, vector<1x4x128xf32>
    %26 = vector.shape_cast %25 : vector<1x4x128xf32> to vector<4x128xf32>
    %27 = vector.shape_cast %24 : vector<4x128xf32> to vector<1x4x128xf32>
    tpu.vector_store %arg4[%c0_9, %c0_10, %c0_11], %27 {strides = array<i32>} : memref<1x4x128xf32, #tpu.memory_space<vmem>>, vector<1x4x128xf32>,
    return
  }
  func.func @transform_0(%arg0: i32, %arg1: i32) -> (i32, i32, i32) {
    %c0_i32 = arith.constant 0 : i32
    %c0_i32_0 = arith.constant 0 : i32
    return %arg0, %c0_i32, %arg1 : i32, i32, i32
  }
  func.func @transform_1(%arg0: i32, %arg1: i32) -> (i32, i32) {
    %c0_i32 = arith.constant 0 : i32
    %c0_i32_0 = arith.constant 0 : i32
    %c0_i32_1 = arith.constant 0 : i32
    return %c0_i32, %c0_i32_0 : i32, i32
  }
  func.func @transform_2(%arg0: i32, %arg1: i32) -> (i32, i32, i32) {
    %c0_i32 = arith.constant 0 : i32
    %c0_i32_0 = arith.constant 0 : i32
    return %arg0, %c0_i32, %arg1 : i32, i32, i32
  }
}

</mosaic_0001>

<llo_original>
// kernel: tpu_custom_call.1
$region0: #{tpu_custom_call.1}
  #allocation0 [shape = 'u32[]', space=smem, size = 0x4, offset = 0x4, fixed_abs, tag = 'smem constant byte address 0x4 - core index']
  #allocation1 [shape = 'u32[144,128]{1,0:T(1,128)}', space=vmem, size = 0x12000, scoped, tag = 'internal scratch']
  %s0 = inlined_call_operand.hbm [shape: f32[2,4,256], index: 0, kind: input, shape index: {}]
  %s1 = inlined_call_operand.vmem [shape: f32[4,1], index: 1, kind: input, shape index: {}]
  %s2 = inlined_call_operand.hbm [shape: f32[2,4,256], index: 2, kind: output, shape index: {}]
  %s3 = sld [smem:[#allocation0]]
  $region45: #{tpu_custom_call.1} parent=0
    _
  %s5 = ssub.s32 1, %s3
  %s6 = scalar_select 0, %s5, %s3
  $region1: #{tpu_custom_call.1} parent=0
    #allocation2 [shape = 'u8[4096]{0}', space=vmem, size = 0x1000, scoped, tag = 'input window, operand 0']
    #allocation3 [shape = 's32[2]{0}', space=sflag, size = 0x8, scoped, tag = 'scoped memory for tpu_custom_call.1']
    #allocation4 [shape = 's32[2]{0}', space=sflag, size = 0x8, scoped, tag = 'scoped memory for tpu_custom_call.1']
    #allocation5 [shape = 'u8[4096]{0}', space=vmem, size = 0x1000, scoped, tag = 'output window, operand 0']
    %7 = vsyncpa [#allocation3], 0
    %s8 = scalar_lea.sflag [#allocation3], 1
    %9 = vsyncpa %s8, 0
    %10 = vsyncpa [#allocation4], 0
    %s11 = scalar_lea.sflag [#allocation4], 1
    %12 = vsyncpa %s11, 0
    loop: start=0, step=1, limit=6
    $region2: #{tpu_custom_call.1} parent=1 // loop_pre_header
      _
    $region3: #{tpu_custom_call.1} parent=1 // loop_header
      %s14 = sphi 0, %s18
      %p15 = scmp.ge.s32.totalorder %s14, 6
      %s21 = sphi 0, %s33
      %s22 = sphi 0, %s29
      %s23 = sphi 0, %s21
      %s24 = sphi 0, %s22
      %s25 = sphi 0, %s23
      %s26 = sphi 0, %s24
      %s38 = sphi 0, %s40
      %s41 = sphi 0, %s38
      %s42 = sphi 0, %s41
      %s58 = sphi 0, %s42
      %s62 = sphi 0, %s62
      %s64 = sphi 0, %s62
      %s65 = sphi 0, %s64
      %s79 = sphi 0, %s65
      %s87 = sphi 0, %s89
      %s90 = sphi 0, %s87
      %s91 = sphi 0, %s90
      %s107 = sphi 0, %s91
    $region4: #{tpu_custom_call.1} parent=1 // loop_header_branch
      %17 = sbr.rel (%p15) target = $region8
    $region5: #{tpu_custom_call.1} parent=1 // loop_body
      %s19 = ssub.s32 %s14, 1
      %s20 = ssub.s32 %s14, 2
      %s27 = sadd.s32 1, %s22
      %p28 = scmp.ge.s32.totalorder %s27, 2
      %s29 = scalar_select %p28, 0, %s27
      %s30 = sadd.s32 1, %s21
      %s31 = scalar_select %p28, %s30, %s21
      %p32 = scmp.ge.s32.totalorder %s31, 2
      %s33 = scalar_select %p32, 0, %s31
      %s34 = ssub.s32 %s21, %s33
      %s35 = ssub.s32 %s22, %s29
      %s36 = sor.u32 %s34, %s35
      %p37 = scmp.eq.s32.totalorder %s36, 0
      %s39 = sadd.s32 %s38, 1
      %s40 = scalar_select %p37, %s38, %s39
      %p43 = pneg %p37
      %p44 = scmp.eq.s32.totalorder %s14, 3
      %p45 = por %p43, %p44
      %p46 = scmp.ne.s32.totalorder %s38, %s41
      %p47 = scmp.eq.s32.totalorder %s14, 0
      %p48 = por %p46, %p47
      %p49 = scmp.ne.s32.totalorder %s38, %s41
      %p50 = scmp.eq.s32.totalorder %s19, 3
      %p51 = por %p49, %p50
      %p52 = scmp.ne.s32.totalorder %s41, %s42
      %p53 = scmp.eq.s32.totalorder %s19, 0
      %p54 = por %p52, %p53
      %p55 = scmp.ne.s32.totalorder %s41, %s42
      %p56 = scmp.eq.s32.totalorder %s20, 3
      %p57 = por %p55, %p56
      %p59 = scmp.ne.s32.totalorder %s42, %s58
      %p60 = scmp.eq.s32.totalorder %s20, 0
      %p61 = por %p59, %p60
      %s63 = sadd.s32 %s62, 1
      %p66 = scmp.eq.s32.totalorder %s14, 3
      %p67 = scmp.ne.s32.totalorder %s62, %s64
      %p68 = scmp.eq.s32.totalorder %s14, 0
      %p69 = por %p67, %p68
      %p70 = scmp.ne.s32.totalorder %s62, %s64
      %p71 = scmp.eq.s32.totalorder %s19, 3
      %p72 = por %p70, %p71
      %p73 = scmp.ne.s32.totalorder %s64, %s65
      %p74 = scmp.eq.s32.totalorder %s19, 0
      %p75 = por %p73, %p74
      %p76 = scmp.ne.s32.totalorder %s64, %s65
      %p77 = scmp.eq.s32.totalorder %s20, 3
      %p78 = por %p76, %p77
      %p80 = scmp.ne.s32.totalorder %s65, %s79
      %p81 = scmp.eq.s32.totalorder %s20, 0
      %p82 = por %p80, %p81
      %s83 = ssub.s32 %s21, %s33
      %s84 = ssub.s32 %s22, %s29
      %s85 = sor.u32 %s83, %s84
      %p86 = scmp.eq.s32.totalorder %s85, 0
      %s88 = sadd.s32 %s87, 1
      %s89 = scalar_select %p86, %s87, %s88
      %p92 = pneg %p86
      %p93 = scmp.eq.s32.totalorder %s14, 3
      %p94 = por %p92, %p93
      %p95 = scmp.ne.s32.totalorder %s87, %s90
      %p96 = scmp.eq.s32.totalorder %s14, 0
      %p97 = por %p95, %p96
      %p98 = scmp.ne.s32.totalorder %s87, %s90
      %p99 = scmp.eq.s32.totalorder %s19, 3
      %p100 = por %p98, %p99
      %p101 = scmp.ne.s32.totalorder %s90, %s91
      %p102 = scmp.eq.s32.totalorder %s19, 0
      %p103 = por %p101, %p102
      %p104 = scmp.ne.s32.totalorder %s90, %s91
      %p105 = scmp.eq.s32.totalorder %s20, 3
      %p106 = por %p104, %p105
      %p108 = scmp.ne.s32.totalorder %s91, %s107
      %p109 = scmp.eq.s32.totalorder %s20, 0
      %p110 = por %p108, %p109
      %p111 = scmp.le.s32.totalorder 1, %s14
      %p112 = scmp.lt.s32.totalorder %s14, 5
      %p113 = pnand %p111, %p112
      %p114 = pneg %p113
      // Predicated region
      $region9: #{tpu_custom_call.1} parent=5 // pred_check
        _
      $region10: #{tpu_custom_call.1} parent=5 // pred_check_branch
        %116 = sbr.rel (%p113) target = $region12
      $region11: #{tpu_custom_call.1} parent=5 // pred_region
        %s117 = ssub.s32 %s14, 1
        // Predicated region
        $region13: #{tpu_custom_call.1} parent=11 // pred_check
          %p118 = pneg %p75
        $region14: #{tpu_custom_call.1} parent=11 // pred_check_branch
          %120 = sbr.rel (%p118) target = $region16
        $region15: #{tpu_custom_call.1} parent=11 // pred_region
          _
        $region16: #{tpu_custom_call.1} parent=11 // pred_fallthru
          _
      $region12: #{tpu_custom_call.1} parent=5 // pred_fallthru
        _
      %p121 = scmp.lt.s32.totalorder %s14, 4
      // Predicated region
      $region17: #{tpu_custom_call.1} parent=5 // pred_check
        %p122 = pneg %p121
      $region18: #{tpu_custom_call.1} parent=5 // pred_check_branch
        %124 = sbr.rel (%p122) target = $region20
      $region19: #{tpu_custom_call.1} parent=5 // pred_region
        // Predicated region
        $region21: #{tpu_custom_call.1} parent=19 // pred_check
          %p125 = pneg %p48
        $region22: #{tpu_custom_call.1} parent=19 // pred_check_branch
          %127 = sbr.rel (%p125) target = $region24
        $region23: #{tpu_custom_call.1} parent=19 // pred_region
          %s128 = sand.u32 %s38, 1
          %s129 = scalar_lea.sflag [#allocation3], %s128
          %s130 = sand.u32 %s38, 1
          %s131 = smul.addr %s130, 4
          %s132 = scalar_lea.vmem [#allocation2], %s131
          %s134 = ssub.s32 64, 64
          %135 = vsyncadd %s129, %s134
          %s136 = smul.addr %s21, 2
          %s137 = sadd.s32 %s22, %s136
          %s138 = smul.addr %s137, 64
          %s139 = scalar_lea.hbm %s0, %s138
          %s141 = sshll.u32 %s132, 4
          %s142 = int_to_ptr.vmem [resolvable:$true] %s141
          %144 = dma.hbm_to_vmem [thread:$0]  %s139, 64, %s142, %s129
        $region24: #{tpu_custom_call.1} parent=19 // pred_fallthru
          _
      $region20: #{tpu_custom_call.1} parent=5 // pred_fallthru
        _
      %p145 = scmp.le.s32.totalorder 1, %s14
      %p146 = scmp.lt.s32.totalorder %s14, 5
      %p147 = pnand %p145, %p146
      %p148 = pneg %p147
      // Predicated region
      $region25: #{tpu_custom_call.1} parent=5 // pred_check
        _
      $region26: #{tpu_custom_call.1} parent=5 // pred_check_branch
        %150 = sbr.rel (%p147) target = $region28
      $region27: #{tpu_custom_call.1} parent=5 // pred_region
        %s151 = ssub.s32 %s14, 1
        %s152 = sand.u32 %s41, 1
        %s153 = scalar_lea.sflag [#allocation3], %s152
        %s154 = sand.u32 %s41, 1
        %s155 = smul.addr %s154, 4
        %s156 = scalar_lea.vmem [#allocation2], %s155
        // Predicated region
        $region29: #{tpu_custom_call.1} parent=27 // pred_check
          %p157 = pneg %p54
        $region30: #{tpu_custom_call.1} parent=27 // pred_check_branch
          %159 = sbr.rel (%p157) target = $region32
        $region31: #{tpu_custom_call.1} parent=27 // pred_region
          %160 = dma.done %s153, 64
        $region32: #{tpu_custom_call.1} parent=27 // pred_fallthru
          _
        %s161 = sand.u32 %s41, 1
        %s162 = scalar_lea.sflag [#allocation3], %s161
        %s163 = sand.u32 %s41, 1
        %s164 = smul.addr %s163, 4
        %s165 = scalar_lea.vmem [#allocation2], %s164
        %p166 = pneg %p54
        %p167 = pneg %p51
        %p168 = pneg %p75
        %p169 = pneg %p72
        %p170 = pneg %p103
        %p171 = pneg %p100
        %s172 = sand.u32 %s90, 1
        %s173 = scalar_lea.sflag [#allocation4], %s172
        %s174 = sand.u32 %s90, 1
        %s175 = smul.addr %s174, 4
        %s176 = scalar_lea.vmem [#allocation5], %s175
        %v177 = vld [vmem:[%s156] sm:$0xf]
        %vm178 = vcmask 1043456
        %v179 = vsel %vm178, %v177, 0.0
        %v180 = vrot.slane %v179, 4
        %v181 = vadd.f32 %v179, %v180
        %v182 = vrot.slane %v181, 2
        %v183 = vadd.f32 %v181, %v182
        %v184 = vrot.slane %v183, 1
        %v185 = vadd.f32 %v183, %v184
        %v186 = vmul.f32 %v185, 0.25
        %v187 = vmul.f32 %v177, %v177
        %v188 = vsel %vm178, %v187, 0.0
        %v189 = vrot.slane %v188, 4
        %v190 = vadd.f32 %v188, %v189
        %v191 = vrot.slane %v190, 2
        %v192 = vadd.f32 %v190, %v191
        %v193 = vrot.slane %v192, 1
        %v194 = vadd.f32 %v192, %v193
        %v195 = vmul.f32 %v194, 0.25
        %v196 = vmul.f32 %v186, %v186
        %v197 = vsub.f32 %v195, %v196
        %v198 = vmax.f32 %v197, 0.0
        %v199 = vadd.f32 %v198, 1e-05
        %v200 = vrsqrt.pop %v199
        %v201 = vld [vmem:[%s1] sm:$0xf]
        %v202 = vsub.f32 %v177, %v186
        %204 = vset.pattern.permute.xlu0 0
        %205 = vperm.xlu0 %204, %v201
        %v206 = vpop.permute.xlu0 %205
        %v208 = vmul.f32 %v200, %v206
        %v209 = vmul.f32 %v202, %v208
        %210 = vst [vmem:[%s176] sm:$0xf] %v209
        %s211 = sand.u32 %s90, 1
        %s212 = scalar_lea.sflag [#allocation4], %s211
        %s213 = sand.u32 %s90, 1
        %s214 = smul.addr %s213, 4
        %s215 = scalar_lea.vmem [#allocation5], %s214
        // Predicated region
        $region33: #{tpu_custom_call.1} parent=27 // pred_check
          %p216 = pneg %p100
        $region34: #{tpu_custom_call.1} parent=27 // pred_check_branch
          %218 = sbr.rel (%p216) target = $region36
        $region35: #{tpu_custom_call.1} parent=27 // pred_region
          %s220 = ssub.s32 64, 64
          %221 = vsyncadd %s212, %s220
          %s222 = smul.addr %s23, 2
          %s223 = sadd.s32 %s24, %s222
          %s224 = smul.addr %s223, 64
          %s225 = scalar_lea.hbm %s2, %s224
          %s227 = sshll.u32 %s215, 4
          %s228 = int_to_ptr.vmem [resolvable:$true] %s227
          %230 = dma.vmem_to_hbm [thread:$0]  %s228, 64, %s225, %s212
        $region36: #{tpu_custom_call.1} parent=27 // pred_fallthru
          _
      $region28: #{tpu_custom_call.1} parent=5 // pred_fallthru
        _
      %p231 = scmp.le.s32.totalorder 2, %s14
      // Predicated region
      $region37: #{tpu_custom_call.1} parent=5 // pred_check
        %p232 = pneg %p231
      $region38: #{tpu_custom_call.1} parent=5 // pred_check_branch
        %234 = sbr.rel (%p232) target = $region40
      $region39: #{tpu_custom_call.1} parent=5 // pred_region
        %s235 = ssub.s32 %s14, 2
        // Predicated region
        $region41: #{tpu_custom_call.1} parent=39 // pred_check
          %p236 = pneg %p106
        $region42: #{tpu_custom_call.1} parent=39 // pred_check_branch
          %238 = sbr.rel (%p236) target = $region44
        $region43: #{tpu_custom_call.1} parent=39 // pred_region
          %s239 = sand.u32 %s91, 1
          %s240 = scalar_lea.sflag [#allocation4], %s239
          %s241 = sand.u32 %s91, 1
          %s242 = smul.addr %s241, 4
          %s243 = scalar_lea.vmem [#allocation5], %s242
          %244 = dma.done %s240, 64
        $region44: #{tpu_custom_call.1} parent=39 // pred_fallthru
          _
      $region40: #{tpu_custom_call.1} parent=5 // pred_fallthru
        _
    $region6: #{tpu_custom_call.1} parent=1 // loop_footer
      %s18 = sadd.s32 1, %s14
    $region7: #{tpu_custom_call.1} parent=1 // loop_footer_branch
      %13 = sbr.rel target = $region3
    $region8: #{tpu_custom_call.1} parent=1 // loop_exit
      _
    %245 = vsyncpa [#allocation3], 1
    %s246 = scalar_lea.sflag [#allocation3], 1
    %247 = vsyncpa %s246, 1
    %248 = vsyncpa [#allocation4], 1
    %s249 = scalar_lea.sflag [#allocation4], 1
    %250 = vsyncpa %s249, 1

</llo_original>
